<compile_context>
chip_gen: v5e
topology: v5e:2x2
jax: 0.10.0
libtpu: 0.0.40
codegen_flags: <defaults>
</compile_context>

<pallas_src>
import numpy as np
import jax
import jax.numpy as jnp
from jax import lax
from jax.experimental import pallas as pl
from jax.experimental.pallas import tpu as pltpu

LRELU_SLOPE = 0.2


def _leaky_relu(x):
    return jnp.where(x > 0, x, LRELU_SLOPE * x)


def convblock_forward(x_nchw, params, *, kernel_size_1=3, padding_1=1,
                      kernel_size_2=None, padding_2=None, batch_block=None):
    """x_nchw: (B, Cin, H, W) -> (B, Cout, H, W), matching ConvBlock.forward."""
    K1 = kernel_size_1
    K2 = K1 if kernel_size_2 is None else kernel_size_2
    P1 = padding_1
    P2 = P1 if padding_2 is None else padding_2

    # TODO(synk): only the stride-1, odd-K, "same" padding (P == (K-1)//2),
    # K1 == K2 configuration is implemented (the default ConvBlock(3, 1) case).
    assert K1 == K2 and K1 % 2 == 1 and P1 == (K1 - 1) // 2 and P2 == P1
    K = K1
    R = K // 2

    B, Cin, H, W = x_nchw.shape
    Cout = params["w1"].shape[0]
    HW = H * W
    Cmax = max(Cin, Cout)

    # Batch block: keep enough grid steps so each v7x TensorCore gets >= 2
    # steps (DMA/compute overlap); only fold more images into the lane axis
    # when there are still >= 8 grid steps left.
    if batch_block is None:
        Bt = 1
        for cand in range(2, B + 1):
            if B % cand == 0 and B // cand >= 8:
                Bt = cand
    else:
        Bt = batch_block
    assert B % Bt == 0
    grid = (B // Bt,)

    # Batch-folded, zero-gapped flat layout (lane axis = flattened pixels):
    #   [ PADV zeros | img0 (HW) | PADV zeros | img1 (HW) | ... | PADV zeros ]
    # The PADV = R*W gap between images is simultaneously image b's bottom halo
    # and image b+1's top halo, so every vertically out-of-range conv tap lands
    # on zeros.  Each dy tap is one contiguous SPAN-wide lane slice covering
    # all images; per-image outputs live at columns [b*SEG, b*SEG + HW).
    PADV = R * W
    SEG = HW + PADV
    SPAN = Bt * SEG - PADV          # = Bt*HW + (Bt-1)*PADV
    HWP = PADV + Bt * SEG           # total padded lane extent

    # NCHW -> (B, C, HW) is a pure reshape; no dtype copy is materialized in
    # HBM (casts happen inside the kernel).  Output keeps the input dtype.
    x_flat = x_nchw.reshape(B, Cin, HW)
    out_dtype = x_nchw.dtype

    # Weights as (dy, Cout, dx*C + c): each dy slice is one fat MXU matmul.
    # bf16 operands, f32 accumulation.  EqConv2d's equalized-LR scale
    # sqrt(2/fan_in) is folded into the synthetic param init (same forward math).
    w1m = jnp.transpose(params["w1"], (2, 0, 3, 1)).reshape(K, Cout, K * Cin)
    w2m = jnp.transpose(params["w2"], (2, 0, 3, 1)).reshape(K, Cout, K * Cout)
    w1m = w1m.astype(jnp.bfloat16)
    w2m = w2m.astype(jnp.bfloat16)
    b1c = params["b1"].reshape(Cout, 1).astype(jnp.float32)
    b2c = params["b2"].reshape(Cout, 1).astype(jnp.float32)

    # Column-validity mask per horizontal tap offset dx (static, host-built).
    # It also zeroes the inter-image gap columns, so the masked dx-copy build
    # preserves the gap/halo zero invariant.
    q = np.arange(SPAN)
    rel = q % SEG
    col = rel % W
    interior = rel < HW
    cmask_np = np.zeros((K, SPAN), np.float32)
    for dx in range(K):
        cmask_np[dx] = (interior & (col >= R - dx) & (col < W + R - dx)
                        ).astype(np.float32)
    cmask = jnp.asarray(cmask_np)

    def kernel(cmask_ref, x_ref, w1_ref, b1_ref, w2_ref, b2_ref,
               out_ref, pad_ref):
        # Zero only the halo / gap columns (interiors are always fully
        # rewritten before they are read).  Done every grid step because with
        # "parallel" megacore sharding each core owns its own scratch and may
        # never execute step 0.
        zblk = jnp.zeros((K * Cmax, PADV), jnp.bfloat16)
        pad_ref[:, 0:PADV] = zblk
        for b in range(Bt):
            g0 = PADV + b * SEG + HW
            pad_ref[:, g0:g0 + PADV] = zblk

        def build_shifted_rows(c):
            # dx != R row blocks: ONE column-masked, horizontally shifted fat
            # copy each, read from the freshly staged dx == R rows (whose
            # halos/gaps are zero, so the +/-R over-read is harmless).  The
            # mask multiply stays in f32 (v5e has no bf16 VALU); only the
            # store is bf16.  K-1 copies instead of K*K-1 tap copies.
            for dx in range(K):
                if dx == R:
                    continue
                s0 = PADV + dx - R
                src = pad_ref[R * c:(R + 1) * c, s0:s0 + SPAN]
                shifted = src.astype(jnp.float32) * cmask_ref[dx:dx + 1, :]
                pad_ref[dx * c:(dx + 1) * c, PADV:PADV + SPAN] = (
                    shifted.astype(jnp.bfloat16))

        def conv_matmuls(c, w_ref, b_ref):
            # K accumulated fat matmuls (Cout, K*c) @ (K*c, SPAN); the dy taps
            # are pure lane-offset reads of pad_ref.  Successive adds into one
            # f32 result let Mosaic keep partials in the MXU result buffer
            # (in-place MRB accumulation on v7x).
            acc = None
            for dy in range(K):
                rhs = pad_ref[0:K * c, dy * W:dy * W + SPAN]
                part = jnp.dot(w_ref[dy], rhs,
                               preferred_element_type=jnp.float32)
                acc = part if acc is None else acc + part
            return _leaky_relu(acc + b_ref[...])      # bias + LeakyReLU in f32

        # ---- conv1: x -> y1 ----
        for b in range(Bt):
            o = PADV + b * SEG
            pad_ref[R * Cin:(R + 1) * Cin, o:o + HW] = (
                x_ref[b].astype(jnp.bfloat16))
        build_shifted_rows(Cin)
        y1 = conv_matmuls(Cin, w1_ref, b1_ref)         # (Cout, SPAN) f32

        # ---- conv2: y1 -> y2 ----
        # pad_ref rows are re-staged with Cout stride; every row/column conv2
        # reads is either freshly written here or a still-zero halo/gap, so no
        # stale conv1 data can leak in.
        for b in range(Bt):
            o = PADV + b * SEG
            pad_ref[R * Cout:(R + 1) * Cout, o:o + HW] = (
                y1[:, b * SEG:b * SEG + HW].astype(jnp.bfloat16))
        build_shifted_rows(Cout)
        y2 = conv_matmuls(Cout, w2_ref, b2_ref)        # (Cout, SPAN) f32

        for b in range(Bt):
            out_ref[b] = y2[:, b * SEG:b * SEG + HW].astype(out_ref.dtype)

    # ---- VMEM budget derived from the actual block/scratch sizes ----
    def _nbytes(shape, dtype):
        return int(np.prod(shape)) * jnp.dtype(dtype).itemsize

    est = (2 * _nbytes((Bt, Cin, HW), x_flat.dtype)         # x blocks (x2 buf)
           + 2 * _nbytes((Bt, Cout, HW), out_dtype)         # out blocks (x2 buf)
           + 2 * (_nbytes(w1m.shape, w1m.dtype) + _nbytes(w2m.shape, w2m.dtype)
                  + 2 * _nbytes((Cout, 1), jnp.float32)
                  + _nbytes(cmask.shape, jnp.float32))      # grid-invariant ops
           + _nbytes((K * Cmax, HWP), jnp.bfloat16)         # padstack scratch
           + 4 * _nbytes((Cout, SPAN), jnp.float32))        # y1/y2/acc temps
    try:
        cap = int(pltpu.get_tpu_info().vmem_capacity_bytes)  # 64 MiB on v7x
    except Exception:
        cap = 64 * 1024 * 1024                               # conservative
    budget = int(0.75 * cap)
    vmem_limit = min(budget, max(32 * 1024 * 1024, 2 * est + (4 << 20)))

    # TODO(synk): at production H*W add a row-strip spatial grid axis (with an
    # R-row halo), pick W a multiple of 128 for lane-aligned dy slices, and
    # single-buffer the grid-invariant operands (pipeline_mode=pl.Buffered(1));
    # unnecessary at this demo size.
    out = pl.pallas_call(
        kernel,
        out_shape=jax.ShapeDtypeStruct((B, Cout, HW), out_dtype),
        grid_spec=pltpu.PrefetchScalarGridSpec(
            num_scalar_prefetch=0,
            grid=grid,
            in_specs=[
                pl.BlockSpec((K, SPAN), lambda i: (0, 0)),               # cmask
                pl.BlockSpec((Bt, Cin, HW), lambda i: (i, 0, 0)),        # x
                pl.BlockSpec((K, Cout, K * Cin), lambda i: (0, 0, 0)),   # w1
                pl.BlockSpec((Cout, 1), lambda i: (0, 0)),               # b1
                pl.BlockSpec((K, Cout, K * Cout), lambda i: (0, 0, 0)),  # w2
                pl.BlockSpec((Cout, 1), lambda i: (0, 0)),               # b2
            ],
            out_specs=pl.BlockSpec((Bt, Cout, HW), lambda i: (i, 0, 0)),
            scratch_shapes=[
                # zero-gapped, batch-folded, bf16 factorized-im2col buffer
                pltpu.VMEM((K * Cmax, HWP), jnp.bfloat16),
            ],
        ),
        compiler_params=pltpu.CompilerParams(
            dimension_semantics=("parallel",),    # batch axis -> both v7x TCs
            vmem_limit_bytes=int(vmem_limit),
        ),
    )(cmask, x_flat, w1m, b1c, w2m, b2c)

    return out.reshape(B, Cout, H, W)             # pure reshape, no transpose


# ---------------- pure-JAX reference (for correctness check) ----------------
def convblock_reference(x_nchw, params, *, padding=1):
    def conv(y, w, b):
        out = lax.conv_general_dilated(
            y, w, (1, 1), [(padding, padding), (padding, padding)],
            dimension_numbers=("NCHW", "OIHW", "NCHW"))
        return out + b.reshape(1, -1, 1, 1)

    y = _leaky_relu(conv(x_nchw.astype(jnp.float32), params["w1"], params["b1"]))
    y = _leaky_relu(conv(y, params["w2"], params["b2"]))
    return y


def init_params(key, Cin, Cout, K):
    ks = jax.random.split(key, 4)
    # EqConv2d: N(0,1) weights with equalized-LR scale sqrt(2 / (Cin*K*K))
    # folded in at init time. Small nonzero biases so the bias path is tested.
    s1 = (2.0 / (Cin * K * K)) ** 0.5
    s2 = (2.0 / (Cout * K * K)) ** 0.5
    return {
        "w1": jax.random.normal(ks[0], (Cout, Cin, K, K), jnp.float32) * s1,
        "b1": jax.random.normal(ks[1], (Cout,), jnp.float32) * 0.1,
        "w2": jax.random.normal(ks[2], (Cout, Cout, K, K), jnp.float32) * s2,
        "b2": jax.random.normal(ks[3], (Cout,), jnp.float32) * 0.1,
    }


if __name__ == "__main__":
    B, Cin, Cout, H, W, K = 4, 4, 8, 16, 16, 3

    key = jax.random.PRNGKey(0)
    k_x, k_par = jax.random.split(key)
    x = jax.random.normal(k_x, (B, Cin, H, W), jnp.float32)
    params = init_params(k_par, Cin, Cout, K)

    out = convblock_forward(x, params, kernel_size_1=K, padding_1=(K - 1) // 2)
    out = jax.block_until_ready(out)

    ref = jax.block_until_ready(convblock_reference(x, params, padding=(K - 1) // 2))
    assert out.shape == (B, Cout, H, W)
    err = float(jnp.max(jnp.abs(out - ref)))
    # bf16 matmul operands (with f32 accumulation) -> tolerance loosened vs the
    # all-f32 lax.conv reference, per the performance review.
    assert err < 5e-2, f"Pallas kernel mismatch vs JAX reference: {err}"

    print("KERNEL_OK")
</pallas_src>

<mosaic_0001>
module attributes {stable_mosaic.version = 11 : i64} {
  func.func @kernel(%arg0: i32, %arg1: memref<3x256xf32, #tpu.memory_space<vmem>>, %arg2: memref<1x4x256xf32, #tpu.memory_space<vmem>>, %arg3: memref<3x8x12xbf16, #tpu.memory_space<vmem>>, %arg4: memref<8x1xf32, #tpu.memory_space<vmem>>, %arg5: memref<3x8x24xbf16, #tpu.memory_space<vmem>>, %arg6: memref<8x1xf32, #tpu.memory_space<vmem>>, %arg7: memref<1x8x256xf32, #tpu.memory_space<vmem>>, %arg8: memref<24x288xbf16, #tpu.memory_space<vmem>>) attributes {dimension_semantics = [#tpu.dimension_semantics<parallel>], iteration_bounds = array<i64: 4>, scalar_prefetch = 0 : i64, scratch_operands = 1 : i64, tpu.core_type = #tpu.core_type<tc>, window_params = [{pipeline_mode = #tpu.pipeline_mode<synchronous>, transform_indices = @transform_0, window_bounds = array<i64: 3, 256>}, {transform_indices = @transform_1, window_bounds = array<i64: 1, 4, 256>}, {pipeline_mode = #tpu.pipeline_mode<synchronous>, transform_indices = @transform_2, window_bounds = array<i64: 3, 8, 12>}, {pipeline_mode = #tpu.pipeline_mode<synchronous>, transform_indices = @transform_3, window_bounds = array<i64: 8, 1>}, {pipeline_mode = #tpu.pipeline_mode<synchronous>, transform_indices = @transform_4, window_bounds = array<i64: 3, 8, 24>}, {pipeline_mode = #tpu.pipeline_mode<synchronous>, transform_indices = @transform_5, window_bounds = array<i64: 8, 1>}, {transform_indices = @transform_6, window_bounds = array<i64: 1, 8, 256>}]} {
    %cst = arith.constant 0.000000e+00 : bf16
    %0 = vector.broadcast %cst : bf16 to vector<24x16xbf16>
    %c0 = arith.constant 0 : index
    %c0_0 = arith.constant 0 : index
    %1 = vector.load %arg8[%c0, %c0_0] : memref<24x288xbf16, #tpu.memory_space<vmem>>, vector<24x16xbf16>
    tpu.vector_store %arg8[%c0, %c0_0], %0 {strides = array<i32>} : memref<24x288xbf16, #tpu.memory_space<vmem>>, vector<24x16xbf16>,
    %c0_1 = arith.constant 0 : index
    %c272 = arith.constant 272 : index
    %2 = vector.load %arg8[%c0_1, %c272] : memref<24x288xbf16, #tpu.memory_space<vmem>>, vector<24x16xbf16>
    tpu.vector_store %arg8[%c0_1, %c272], %0 {strides = array<i32>} : memref<24x288xbf16, #tpu.memory_space<vmem>>, vector<24x16xbf16>,
    %c0_2 = arith.constant 0 : index
    %c0_3 = arith.constant 0 : index
    %c0_4 = arith.constant 0 : index
    %3 = vector.load %arg2[%c0_2, %c0_3, %c0_4] : memref<1x4x256xf32, #tpu.memory_space<vmem>>, vector<1x4x256xf32>
    %4 = vector.shape_cast %3 : vector<1x4x256xf32> to vector<4x256xf32>
    %5 = arith.truncf %4 : vector<4x256xf32> to vector<4x256xbf16>
    %c4 = arith.constant 4 : index
    %c16 = arith.constant 16 : index
    %6 = vector.load %arg8[%c4, %c16] : memref<24x288xbf16, #tpu.memory_space<vmem>>, vector<4x256xbf16>
    tpu.vector_store %arg8[%c4, %c16], %5 {strides = array<i32>} : memref<24x288xbf16, #tpu.memory_space<vmem>>, vector<4x256xbf16>,
    %c4_5 = arith.constant 4 : index
    %c15 = arith.constant 15 : index
    %7 = vector.load %arg8[%c4_5, %c15] : memref<24x288xbf16, #tpu.memory_space<vmem>>, vector<4x256xbf16>
    %8 = arith.extf %7 : vector<4x256xbf16> to vector<4x256xf32>
    %c0_6 = arith.constant 0 : index
    %c0_7 = arith.constant 0 : index
    %9 = vector.load %arg1[%c0_6, %c0_7] : memref<3x256xf32, #tpu.memory_space<vmem>>, vector<1x256xf32>
    %10 = vector.broadcast %9 : vector<1x256xf32> to vector<4x256xf32>
    %11 = arith.mulf %8, %10 : vector<4x256xf32>
    %12 = arith.truncf %11 : vector<4x256xf32> to vector<4x256xbf16>
    %c0_8 = arith.constant 0 : index
    %c16_9 = arith.constant 16 : index
    %13 = vector.load %arg8[%c0_8, %c16_9] : memref<24x288xbf16, #tpu.memory_space<vmem>>, vector<4x256xbf16>
    tpu.vector_store %arg8[%c0_8, %c16_9], %12 {strides = array<i32>} : memref<24x288xbf16, #tpu.memory_space<vmem>>, vector<4x256xbf16>,
    %c4_10 = arith.constant 4 : index
    %c17 = arith.constant 17 : index
    %14 = vector.load %arg8[%c4_10, %c17] : memref<24x288xbf16, #tpu.memory_space<vmem>>, vector<4x256xbf16>
    %15 = arith.extf %14 : vector<4x256xbf16> to vector<4x256xf32>
    %c2 = arith.constant 2 : index
    %c0_11 = arith.constant 0 : index
    %16 = vector.load %arg1[%c2, %c0_11] : memref<3x256xf32, #tpu.memory_space<vmem>>, vector<1x256xf32>
    %17 = vector.broadcast %16 : vector<1x256xf32> to vector<4x256xf32>
    %18 = arith.mulf %15, %17 : vector<4x256xf32>
    %19 = arith.truncf %18 : vector<4x256xf32> to vector<4x256xbf16>
    %c8 = arith.constant 8 : index
    %c16_12 = arith.constant 16 : index
    %20 = vector.load %arg8[%c8, %c16_12] : memref<24x288xbf16, #tpu.memory_space<vmem>>, vector<4x256xbf16>
    tpu.vector_store %arg8[%c8, %c16_12], %19 {strides = array<i32>} : memref<24x288xbf16, #tpu.memory_space<vmem>>, vector<4x256xbf16>,
    %c0_13 = arith.constant 0 : index
    %c0_14 = arith.constant 0 : index
    %21 = vector.load %arg8[%c0_13, %c0_14] : memref<24x288xbf16, #tpu.memory_space<vmem>>, vector<12x256xbf16>
    %c0_15 = arith.constant 0 : index
    %c0_16 = arith.constant 0 : index
    %c0_17 = arith.constant 0 : index
    %22 = vector.load %arg3[%c0_15, %c0_16, %c0_17] : memref<3x8x12xbf16, #tpu.memory_space<vmem>>, vector<1x8x12xbf16>
    %23 = vector.shape_cast %22 : vector<1x8x12xbf16> to vector<8x12xbf16>
    %cst_18 = arith.constant dense<0.000000e+00> : vector<8x256xf32>
    %24 = tpu.matmul %23, %21, %cst_18 {dimension_numbers = #tpu.dot_dimension_numbers<[1], [0], [0], [1], [0, 0, 1, 1], [], []>} : vector<8x12xbf16>, vector<12x256xbf16>, vector<8x256xf32> -> vector<8x256xf32>
    %c0_19 = arith.constant 0 : index
    %c16_20 = arith.constant 16 : index
    %25 = vector.load %arg8[%c0_19, %c16_20] : memref<24x288xbf16, #tpu.memory_space<vmem>>, vector<12x256xbf16>
    %c1 = arith.constant 1 : index
    %c0_21 = arith.constant 0 : index
    %c0_22 = arith.constant 0 : index
    %26 = vector.load %arg3[%c1, %c0_21, %c0_22] : memref<3x8x12xbf16, #tpu.memory_space<vmem>>, vector<1x8x12xbf16>
    %27 = vector.shape_cast %26 : vector<1x8x12xbf16> to vector<8x12xbf16>
    %cst_23 = arith.constant dense<0.000000e+00> : vector<8x256xf32>
    %28 = tpu.matmul %27, %25, %cst_23 {dimension_numbers = #tpu.dot_dimension_numbers<[1], [0], [0], [1], [0, 0, 1, 1], [], []>} : vector<8x12xbf16>, vector<12x256xbf16>, vector<8x256xf32> -> vector<8x256xf32>
    %29 = arith.addf %24, %28 : vector<8x256xf32>
    %c0_24 = arith.constant 0 : index
    %c32 = arith.constant 32 : index
    %30 = vector.load %arg8[%c0_24, %c32] : memref<24x288xbf16, #tpu.memory_space<vmem>>, vector<12x256xbf16>
    %c2_25 = arith.constant 2 : index
    %c0_26 = arith.constant 0 : index
    %c0_27 = arith.constant 0 : index
    %31 = vector.load %arg3[%c2_25, %c0_26, %c0_27] : memref<3x8x12xbf16, #tpu.memory_space<vmem>>, vector<1x8x12xbf16>
    %32 = vector.shape_cast %31 : vector<1x8x12xbf16> to vector<8x12xbf16>
    %cst_28 = arith.constant dense<0.000000e+00> : vector<8x256xf32>
    %33 = tpu.matmul %32, %30, %cst_28 {dimension_numbers = #tpu.dot_dimension_numbers<[1], [0], [0], [1], [0, 0, 1, 1], [], []>} : vector<8x12xbf16>, vector<12x256xbf16>, vector<8x256xf32> -> vector<8x256xf32>
    %34 = arith.addf %29, %33 : vector<8x256xf32>
    %c0_29 = arith.constant 0 : index
    %c0_30 = arith.constant 0 : index
    %35 = vector.load %arg4[%c0_29, %c0_30] : memref<8x1xf32, #tpu.memory_space<vmem>>, vector<8x1xf32>
    %36 = vector.broadcast %35 : vector<8x1xf32> to vector<8x256xf32>
    %37 = arith.addf %34, %36 : vector<8x256xf32>
    %cst_31 = arith.constant 0.000000e+00 : f32
    %38 = vector.broadcast %cst_31 : f32 to vector<8x256xf32>
    %39 = arith.cmpf ogt, %37, %38 : vector<8x256xf32>
    %cst_32 = arith.constant 2.000000e-01 : f32
    %40 = vector.broadcast %cst_32 : f32 to vector<8x256xf32>
    %41 = arith.mulf %40, %37 : vector<8x256xf32>
    %42 = arith.select %39, %37, %41 : vector<8x256xi1>, vector<8x256xf32>
    %43 = arith.truncf %42 : vector<8x256xf32> to vector<8x256xbf16>
    %c8_33 = arith.constant 8 : index
    %c16_34 = arith.constant 16 : index
    %44 = vector.load %arg8[%c8_33, %c16_34] : memref<24x288xbf16, #tpu.memory_space<vmem>>, vector<8x256xbf16>
    tpu.vector_store %arg8[%c8_33, %c16_34], %43 {strides = array<i32>} : memref<24x288xbf16, #tpu.memory_space<vmem>>, vector<8x256xbf16>,
    %c8_35 = arith.constant 8 : index
    %c15_36 = arith.constant 15 : index
    %45 = vector.load %arg8[%c8_35, %c15_36] : memref<24x288xbf16, #tpu.memory_space<vmem>>, vector<8x256xbf16>
    %46 = arith.extf %45 : vector<8x256xbf16> to vector<8x256xf32>
    %c0_37 = arith.constant 0 : index
    %c0_38 = arith.constant 0 : index
    %47 = vector.load %arg1[%c0_37, %c0_38] : memref<3x256xf32, #tpu.memory_space<vmem>>, vector<1x256xf32>
    %48 = vector.broadcast %47 : vector<1x256xf32> to vector<8x256xf32>
    %49 = arith.mulf %46, %48 : vector<8x256xf32>
    %50 = arith.truncf %49 : vector<8x256xf32> to vector<8x256xbf16>
    %c0_39 = arith.constant 0 : index
    %c16_40 = arith.constant 16 : index
    %51 = vector.load %arg8[%c0_39, %c16_40] : memref<24x288xbf16, #tpu.memory_space<vmem>>, vector<8x256xbf16>
    tpu.vector_store %arg8[%c0_39, %c16_40], %50 {strides = array<i32>} : memref<24x288xbf16, #tpu.memory_space<vmem>>, vector<8x256xbf16>,
    %c8_41 = arith.constant 8 : index
    %c17_42 = arith.constant 17 : index
    %52 = vector.load %arg8[%c8_41, %c17_42] : memref<24x288xbf16, #tpu.memory_space<vmem>>, vector<8x256xbf16>
    %53 = arith.extf %52 : vector<8x256xbf16> to vector<8x256xf32>
    %c2_43 = arith.constant 2 : index
    %c0_44 = arith.constant 0 : index
    %54 = vector.load %arg1[%c2_43, %c0_44] : memref<3x256xf32, #tpu.memory_space<vmem>>, vector<1x256xf32>
    %55 = vector.broadcast %54 : vector<1x256xf32> to vector<8x256xf32>
    %56 = arith.mulf %53, %55 : vector<8x256xf32>
    %57 = arith.truncf %56 : vector<8x256xf32> to vector<8x256xbf16>
    %c16_45 = arith.constant 16 : index
    %c16_46 = arith.constant 16 : index
    %58 = vector.load %arg8[%c16_45, %c16_46] : memref<24x288xbf16, #tpu.memory_space<vmem>>, vector<8x256xbf16>
    tpu.vector_store %arg8[%c16_45, %c16_46], %57 {strides = array<i32>} : memref<24x288xbf16, #tpu.memory_space<vmem>>, vector<8x256xbf16>,
    %c0_47 = arith.constant 0 : index
    %c0_48 = arith.constant 0 : index
    %59 = vector.load %arg8[%c0_47, %c0_48] : memref<24x288xbf16, #tpu.memory_space<vmem>>, vector<24x256xbf16>
    %c0_49 = arith.constant 0 : index
    %c0_50 = arith.constant 0 : index
    %c0_51 = arith.constant 0 : index
    %60 = vector.load %arg5[%c0_49, %c0_50, %c0_51] : memref<3x8x24xbf16, #tpu.memory_space<vmem>>, vector<1x8x24xbf16>
    %61 = vector.shape_cast %60 : vector<1x8x24xbf16> to vector<8x24xbf16>
    %cst_52 = arith.constant dense<0.000000e+00> : vector<8x256xf32>
    %62 = tpu.matmul %61, %59, %cst_52 {dimension_numbers = #tpu.dot_dimension_numbers<[1], [0], [0], [1], [0, 0, 1, 1], [], []>} : vector<8x24xbf16>, vector<24x256xbf16>, vector<8x256xf32> -> vector<8x256xf32>
    %c0_53 = arith.constant 0 : index
    %c16_54 = arith.constant 16 : index
    %63 = vector.load %arg8[%c0_53, %c16_54] : memref<24x288xbf16, #tpu.memory_space<vmem>>, vector<24x256xbf16>
    %c1_55 = arith.constant 1 : index
    %c0_56 = arith.constant 0 : index
    %c0_57 = arith.constant 0 : index
    %64 = vector.load %arg5[%c1_55, %c0_56, %c0_57] : memref<3x8x24xbf16, #tpu.memory_space<vmem>>, vector<1x8x24xbf16>
    %65 = vector.shape_cast %64 : vector<1x8x24xbf16> to vector<8x24xbf16>
    %cst_58 = arith.constant dense<0.000000e+00> : vector<8x256xf32>
    %66 = tpu.matmul %65, %63, %cst_58 {dimension_numbers = #tpu.dot_dimension_numbers<[1], [0], [0], [1], [0, 0, 1, 1], [], []>} : vector<8x24xbf16>, vector<24x256xbf16>, vector<8x256xf32> -> vector<8x256xf32>
    %67 = arith.addf %62, %66 : vector<8x256xf32>
    %c0_59 = arith.constant 0 : index
    %c32_60 = arith.constant 32 : index
    %68 = vector.load %arg8[%c0_59, %c32_60] : memref<24x288xbf16, #tpu.memory_space<vmem>>, vector<24x256xbf16>
    %c2_61 = arith.constant 2 : index
    %c0_62 = arith.constant 0 : index
    %c0_63 = arith.constant 0 : index
    %69 = vector.load %arg5[%c2_61, %c0_62, %c0_63] : memref<3x8x24xbf16, #tpu.memory_space<vmem>>, vector<1x8x24xbf16>
    %70 = vector.shape_cast %69 : vector<1x8x24xbf16> to vector<8x24xbf16>
    %cst_64 = arith.constant dense<0.000000e+00> : vector<8x256xf32>
    %71 = tpu.matmul %70, %68, %cst_64 {dimension_numbers = #tpu.dot_dimension_numbers<[1], [0], [0], [1], [0, 0, 1, 1], [], []>} : vector<8x24xbf16>, vector<24x256xbf16>, vector<8x256xf32> -> vector<8x256xf32>
    %72 = arith.addf %67, %71 : vector<8x256xf32>
    %c0_65 = arith.constant 0 : index
    %c0_66 = arith.constant 0 : index
    %73 = vector.load %arg6[%c0_65, %c0_66] : memref<8x1xf32, #tpu.memory_space<vmem>>, vector<8x1xf32>
    %74 = vector.broadcast %73 : vector<8x1xf32> to vector<8x256xf32>
    %75 = arith.addf %72, %74 : vector<8x256xf32>
    %cst_67 = arith.constant 0.000000e+00 : f32
    %76 = vector.broadcast %cst_67 : f32 to vector<8x256xf32>
    %77 = arith.cmpf ogt, %75, %76 : vector<8x256xf32>
    %cst_68 = arith.constant 2.000000e-01 : f32
    %78 = vector.broadcast %cst_68 : f32 to vector<8x256xf32>
    %79 = arith.mulf %78, %75 : vector<8x256xf32>
    %80 = arith.select %77, %75, %79 : vector<8x256xi1>, vector<8x256xf32>
    %c0_69 = arith.constant 0 : index
    %c0_70 = arith.constant 0 : index
    %c0_71 = arith.constant 0 : index
    %81 = vector.load %arg7[%c0_69, %c0_70, %c0_71] : memref<1x8x256xf32, #tpu.memory_space<vmem>>, vector<1x8x256xf32>
    %82 = vector.shape_cast %81 : vector<1x8x256xf32> to vector<8x256xf32>
    %83 = vector.shape_cast %80 : vector<8x256xf32> to vector<1x8x256xf32>
    tpu.vector_store %arg7[%c0_69, %c0_70, %c0_71], %83 {strides = array<i32>} : memref<1x8x256xf32, #tpu.memory_space<vmem>>, vector<1x8x256xf32>,
    return
  }
  func.func @transform_0(%arg0: i32) -> (i32, i32) {
    %c0_i32 = arith.constant 0 : i32
    %c0_i32_0 = arith.constant 0 : i32
    %c0_i32_1 = arith.constant 0 : i32
    return %c0_i32, %c0_i32_0 : i32, i32
  }
  func.func @transform_1(%arg0: i32) -> (i32, i32, i32) {
    %c0_i32 = arith.constant 0 : i32
    %c0_i32_0 = arith.constant 0 : i32
    %c0_i32_1 = arith.constant 0 : i32
    return %arg0, %c0_i32, %c0_i32_0 : i32, i32, i32
  }
  func.func @transform_2(%arg0: i32) -> (i32, i32, i32) {
    %c0_i32 = arith.constant 0 : i32
    %c0_i32_0 = arith.constant 0 : i32
    %c0_i32_1 = arith.constant 0 : i32
    %c0_i32_2 = arith.constant 0 : i32
    return %c0_i32, %c0_i32_0, %c0_i32_1 : i32, i32, i32
  }
  func.func @transform_3(%arg0: i32) -> (i32, i32) {
    %c0_i32 = arith.constant 0 : i32
    %c0_i32_0 = arith.constant 0 : i32
    %c0_i32_1 = arith.constant 0 : i32
    return %c0_i32, %c0_i32_0 : i32, i32
  }
  func.func @transform_4(%arg0: i32) -> (i32, i32, i32) {
    %c0_i32 = arith.constant 0 : i32
    %c0_i32_0 = arith.constant 0 : i32
    %c0_i32_1 = arith.constant 0 : i32
    %c0_i32_2 = arith.constant 0 : i32
    return %c0_i32, %c0_i32_0, %c0_i32_1 : i32, i32, i32
  }
  func.func @transform_5(%arg0: i32) -> (i32, i32) {
    %c0_i32 = arith.constant 0 : i32
    %c0_i32_0 = arith.constant 0 : i32
    %c0_i32_1 = arith.constant 0 : i32
    return %c0_i32, %c0_i32_0 : i32, i32
  }
  func.func @transform_6(%arg0: i32) -> (i32, i32, i32) {
    %c0_i32 = arith.constant 0 : i32
    %c0_i32_0 = arith.constant 0 : i32
    %c0_i32_1 = arith.constant 0 : i32
    return %arg0, %c0_i32, %c0_i32_0 : i32, i32, i32
  }
}

</mosaic_0001>

<llo_original>
// kernel: tpu_custom_call.1
$region0: #{tpu_custom_call.1}
  #allocation0 [shape = 'u32[]', space=smem, size = 0x4, offset = 0x4, fixed_abs, tag = 'smem constant byte address 0x4 - core index']
  #allocation1 [shape = 'u32[72,128]{1,0:T(1,128)}', space=vmem, size = 0x9000, scoped, tag = 'internal scratch']
  #allocation2 [shape = 'bf16[24,288]{1,0:T(8,128)(2,1)}', space=vmem, size = 0x4800, scoped, tag = 'scratch operand']
  %s0 = inlined_call_operand.hbm [shape: f32[3,256], index: 0, kind: input, shape index: {}]
  %s1 = inlined_call_operand.hbm [shape: f32[4,4,256], index: 1, kind: input, shape index: {}]
  %s2 = inlined_call_operand.vmem [shape: bf16[3,8,12], index: 2, kind: input, shape index: {}]
  %s3 = inlined_call_operand.vmem [shape: f32[8,1], index: 3, kind: input, shape index: {}]
  %s4 = inlined_call_operand.hbm [shape: bf16[3,8,24], index: 4, kind: input, shape index: {}]
  %s5 = inlined_call_operand.vmem [shape: f32[8,1], index: 5, kind: input, shape index: {}]
  %s6 = inlined_call_operand.hbm [shape: f32[4,8,256], index: 6, kind: output, shape index: {}]
  %s7 = sld [smem:[#allocation0]]
  $region69: #{tpu_custom_call.1} parent=0
    _
  %s9 = ssub.s32 1, %s7
  %s10 = scalar_select 0, %s9, %s7
  $region1: #{tpu_custom_call.1} parent=0
    #allocation3 [shape = 'u8[4096]{0}', space=vmem, size = 0x1000, scoped, tag = 'input window, operand 0, single buffered']
    #allocation4 [shape = 's32[2]{0}', space=sflag, size = 0x8, scoped, tag = 'scoped memory for tpu_custom_call.1']
    #allocation5 [shape = 's32[2]{0}', space=sflag, size = 0x8, scoped, tag = 'scoped memory for tpu_custom_call.1']
    #allocation6 [shape = 'u8[8192]{0}', space=vmem, size = 0x2000, scoped, tag = 'input window, operand 1']
    #allocation7 [shape = 's32[2]{0}', space=sflag, size = 0x8, scoped, tag = 'scoped memory for tpu_custom_call.1']
    #allocation8 [shape = 'u8[6144]{0}', space=vmem, size = 0x1800, scoped, tag = 'input window, operand 4, single buffered']
    #allocation9 [shape = 'u8[16384]{0}', space=vmem, size = 0x4000, scoped, tag = 'output window, operand 0']
    %11 = vsyncpa [#allocation4], 0
    %12 = vsyncpa [#allocation7], 0
    %s13 = scalar_lea.sflag [#allocation7], 1
    %14 = vsyncpa %s13, 0
    %15 = vsyncpa [#allocation5], 0
    %s16 = scalar_lea.sflag [#allocation5], 1
    %17 = vsyncpa %s16, 0
    loop: start=0, step=1, limit=6
    $region2: #{tpu_custom_call.1} parent=1 // loop_pre_header
      _
    $region3: #{tpu_custom_call.1} parent=1 // loop_header
      %s19 = sphi 0, %s23
      %p20 = scmp.ge.s32.totalorder %s19, 6
      %s27 = sphi 0, %s27
      %s29 = sphi 0, %s27
      %s30 = sphi 0, %s29
      %s44 = sphi 0, %s30
      %s50 = sphi 0, %s52
      %s53 = sphi 0, %s50
      %s54 = sphi 0, %s53
      %s70 = sphi 0, %s54
      %s74 = sphi 0, %s74
      %s76 = sphi 0, %s74
      %s77 = sphi 0, %s76
      %s91 = sphi 0, %s77
      %s95 = sphi 0, %s95
      %s97 = sphi 0, %s95
      %s98 = sphi 0, %s97
      %s112 = sphi 0, %s98
      %s116 = sphi 0, %s116
      %s118 = sphi 0, %s116
      %s119 = sphi 0, %s118
      %s133 = sphi 0, %s119
      %s137 = sphi 0, %s137
      %s139 = sphi 0, %s137
      %s140 = sphi 0, %s139
      %s154 = sphi 0, %s140
      %s160 = sphi 0, %s162
      %s163 = sphi 0, %s160
      %s164 = sphi 0, %s163
      %s180 = sphi 0, %s164
    $region4: #{tpu_custom_call.1} parent=1 // loop_header_branch
      %22 = sbr.rel (%p20) target = $region8
    $region5: #{tpu_custom_call.1} parent=1 // loop_body
      %s24 = ssub.s32 %s19, 1
      %s25 = ssub.s32 %s19, 2
      %s26 = sadd.s32 %s19, 1
      %s28 = sadd.s32 %s27, 1
      %p31 = scmp.eq.s32.totalorder %s19, 3
      %p32 = scmp.ne.s32.totalorder %s27, %s29
      %p33 = scmp.eq.s32.totalorder %s19, 0
      %p34 = por %p32, %p33
      %p35 = scmp.ne.s32.totalorder %s27, %s29
      %p36 = scmp.eq.s32.totalorder %s24, 3
      %p37 = por %p35, %p36
      %p38 = scmp.ne.s32.totalorder %s29, %s30
      %p39 = scmp.eq.s32.totalorder %s24, 0
      %p40 = por %p38, %p39
      %p41 = scmp.ne.s32.totalorder %s29, %s30
      %p42 = scmp.eq.s32.totalorder %s25, 3
      %p43 = por %p41, %p42
      %p45 = scmp.ne.s32.totalorder %s30, %s44
      %p46 = scmp.eq.s32.totalorder %s25, 0
      %p47 = por %p45, %p46
      %s48 = ssub.s32 %s19, %s26
      %p49 = scmp.eq.s32.totalorder %s48, 0
      %s51 = sadd.s32 %s50, 1
      %s52 = scalar_select %p49, %s50, %s51
      %p55 = pneg %p49
      %p56 = scmp.eq.s32.totalorder %s19, 3
      %p57 = por %p55, %p56
      %p58 = scmp.ne.s32.totalorder %s50, %s53
      %p59 = scmp.eq.s32.totalorder %s19, 0
      %p60 = por %p58, %p59
      %p61 = scmp.ne.s32.totalorder %s50, %s53
      %p62 = scmp.eq.s32.totalorder %s24, 3
      %p63 = por %p61, %p62
      %p64 = scmp.ne.s32.totalorder %s53, %s54
      %p65 = scmp.eq.s32.totalorder %s24, 0
      %p66 = por %p64, %p65
      %p67 = scmp.ne.s32.totalorder %s53, %s54
      %p68 = scmp.eq.s32.totalorder %s25, 3
      %p69 = por %p67, %p68
      %p71 = scmp.ne.s32.totalorder %s54, %s70
      %p72 = scmp.eq.s32.totalorder %s25, 0
      %p73 = por %p71, %p72
      %s75 = sadd.s32 %s74, 1
      %p78 = scmp.eq.s32.totalorder %s19, 3
      %p79 = scmp.ne.s32.totalorder %s74, %s76
      %p80 = scmp.eq.s32.totalorder %s19, 0
      %p81 = por %p79, %p80
      %p82 = scmp.ne.s32.totalorder %s74, %s76
      %p83 = scmp.eq.s32.totalorder %s24, 3
      %p84 = por %p82, %p83
      %p85 = scmp.ne.s32.totalorder %s76, %s77
      %p86 = scmp.eq.s32.totalorder %s24, 0
      %p87 = por %p85, %p86
      %p88 = scmp.ne.s32.totalorder %s76, %s77
      %p89 = scmp.eq.s32.totalorder %s25, 3
      %p90 = por %p88, %p89
      %p92 = scmp.ne.s32.totalorder %s77, %s91
      %p93 = scmp.eq.s32.totalorder %s25, 0
      %p94 = por %p92, %p93
      %s96 = sadd.s32 %s95, 1
      %p99 = scmp.eq.s32.totalorder %s19, 3
      %p100 = scmp.ne.s32.totalorder %s95, %s97
      %p101 = scmp.eq.s32.totalorder %s19, 0
      %p102 = por %p100, %p101
      %p103 = scmp.ne.s32.totalorder %s95, %s97
      %p104 = scmp.eq.s32.totalorder %s24, 3
      %p105 = por %p103, %p104
      %p106 = scmp.ne.s32.totalorder %s97, %s98
      %p107 = scmp.eq.s32.totalorder %s24, 0
      %p108 = por %p106, %p107
      %p109 = scmp.ne.s32.totalorder %s97, %s98
      %p110 = scmp.eq.s32.totalorder %s25, 3
      %p111 = por %p109, %p110
      %p113 = scmp.ne.s32.totalorder %s98, %s112
      %p114 = scmp.eq.s32.totalorder %s25, 0
      %p115 = por %p113, %p114
      %s117 = sadd.s32 %s116, 1
      %p120 = scmp.eq.s32.totalorder %s19, 3
      %p121 = scmp.ne.s32.totalorder %s116, %s118
      %p122 = scmp.eq.s32.totalorder %s19, 0
      %p123 = por %p121, %p122
      %p124 = scmp.ne.s32.totalorder %s116, %s118
      %p125 = scmp.eq.s32.totalorder %s24, 3
      %p126 = por %p124, %p125
      %p127 = scmp.ne.s32.totalorder %s118, %s119
      %p128 = scmp.eq.s32.totalorder %s24, 0
      %p129 = por %p127, %p128
      %p130 = scmp.ne.s32.totalorder %s118, %s119
      %p131 = scmp.eq.s32.totalorder %s25, 3
      %p132 = por %p130, %p131
      %p134 = scmp.ne.s32.totalorder %s119, %s133
      %p135 = scmp.eq.s32.totalorder %s25, 0
      %p136 = por %p134, %p135
      %s138 = sadd.s32 %s137, 1
      %p141 = scmp.eq.s32.totalorder %s19, 3
      %p142 = scmp.ne.s32.totalorder %s137, %s139
      %p143 = scmp.eq.s32.totalorder %s19, 0
      %p144 = por %p142, %p143
      %p145 = scmp.ne.s32.totalorder %s137, %s139
      %p146 = scmp.eq.s32.totalorder %s24, 3
      %p147 = por %p145, %p146
      %p148 = scmp.ne.s32.totalorder %s139, %s140
      %p149 = scmp.eq.s32.totalorder %s24, 0
      %p150 = por %p148, %p149
      %p151 = scmp.ne.s32.totalorder %s139, %s140
      %p152 = scmp.eq.s32.totalorder %s25, 3
      %p153 = por %p151, %p152
      %p155 = scmp.ne.s32.totalorder %s140, %s154
      %p156 = scmp.eq.s32.totalorder %s25, 0
      %p157 = por %p155, %p156
      %s158 = ssub.s32 %s19, %s26
      %p159 = scmp.eq.s32.totalorder %s158, 0
      %s161 = sadd.s32 %s160, 1
      %s162 = scalar_select %p159, %s160, %s161
      %p165 = pneg %p159
      %p166 = scmp.eq.s32.totalorder %s19, 3
      %p167 = por %p165, %p166
      %p168 = scmp.ne.s32.totalorder %s160, %s163
      %p169 = scmp.eq.s32.totalorder %s19, 0
      %p170 = por %p168, %p169
      %p171 = scmp.ne.s32.totalorder %s160, %s163
      %p172 = scmp.eq.s32.totalorder %s24, 3
      %p173 = por %p171, %p172
      %p174 = scmp.ne.s32.totalorder %s163, %s164
      %p175 = scmp.eq.s32.totalorder %s24, 0
      %p176 = por %p174, %p175
      %p177 = scmp.ne.s32.totalorder %s163, %s164
      %p178 = scmp.eq.s32.totalorder %s25, 3
      %p179 = por %p177, %p178
      %p181 = scmp.ne.s32.totalorder %s164, %s180
      %p182 = scmp.eq.s32.totalorder %s25, 0
      %p183 = por %p181, %p182
      %p184 = scmp.le.s32.totalorder 1, %s19
      %p185 = scmp.lt.s32.totalorder %s19, 5
      %p186 = pnand %p184, %p185
      %p187 = pneg %p186
      // Predicated region
      $region9: #{tpu_custom_call.1} parent=5 // pred_check
        _
      $region10: #{tpu_custom_call.1} parent=5 // pred_check_branch
        %189 = sbr.rel (%p186) target = $region12
      $region11: #{tpu_custom_call.1} parent=5 // pred_region
        %s190 = ssub.s32 %s19, 1
        // Predicated region
        $region13: #{tpu_custom_call.1} parent=11 // pred_check
          %p191 = pneg %p40
        $region14: #{tpu_custom_call.1} parent=11 // pred_check_branch
          %193 = sbr.rel (%p191) target = $region16
        $region15: #{tpu_custom_call.1} parent=11 // pred_region
          %195 = vsyncadd [#allocation4], 0
          %s197 = sshll.u32 %s0, 4
          %s198 = int_to_ptr.hbm [resolvable:$true] %s197
          %s199 = sshll.u32 [#allocation3], 4
          %s200 = int_to_ptr.vmem [resolvable:$true] %s199
          %202 = dma.hbm_to_vmem [thread:$0]  %s198, 128, %s200, [#allocation4]
        $region16: #{tpu_custom_call.1} parent=11 // pred_fallthru
          _
        // Predicated region
        $region17: #{tpu_custom_call.1} parent=11 // pred_check
          %p203 = pneg %p87
        $region18: #{tpu_custom_call.1} parent=11 // pred_check_branch
          %205 = sbr.rel (%p203) target = $region20
        $region19: #{tpu_custom_call.1} parent=11 // pred_region
          _
        $region20: #{tpu_custom_call.1} parent=11 // pred_fallthru
          _
        // Predicated region
        $region21: #{tpu_custom_call.1} parent=11 // pred_check
          %p206 = pneg %p108
        $region22: #{tpu_custom_call.1} parent=11 // pred_check_branch
          %208 = sbr.rel (%p206) target = $region24
        $region23: #{tpu_custom_call.1} parent=11 // pred_region
          _
        $region24: #{tpu_custom_call.1} parent=11 // pred_fallthru
          _
        // Predicated region
        $region25: #{tpu_custom_call.1} parent=11 // pred_check
          %p209 = pneg %p129
        $region26: #{tpu_custom_call.1} parent=11 // pred_check_branch
          %211 = sbr.rel (%p209) target = $region28
        $region27: #{tpu_custom_call.1} parent=11 // pred_region
          %213 = vsyncadd [#allocation7], 0
          %s214 = sshll.u32 %s4, 4
          %s215 = int_to_ptr.hbm [resolvable:$true] %s214
          %s216 = sshll.u32 [#allocation8], 4
          %s217 = int_to_ptr.vmem [resolvable:$true] %s216
          %222 = dma.hbm_to_vmem [thread:$0]  %s215, 192, %s217, [#allocation7], 64, 64, 4
        $region28: #{tpu_custom_call.1} parent=11 // pred_fallthru
          _
        // Predicated region
        $region29: #{tpu_custom_call.1} parent=11 // pred_check
          %p223 = pneg %p150
        $region30: #{tpu_custom_call.1} parent=11 // pred_check_branch
          %225 = sbr.rel (%p223) target = $region32
        $region31: #{tpu_custom_call.1} parent=11 // pred_region
          _
        $region32: #{tpu_custom_call.1} parent=11 // pred_fallthru
          _
      $region12: #{tpu_custom_call.1} parent=5 // pred_fallthru
        _
      %p226 = scmp.lt.s32.totalorder %s19, 4
      // Predicated region
      $region33: #{tpu_custom_call.1} parent=5 // pred_check
        %p227 = pneg %p226
      $region34: #{tpu_custom_call.1} parent=5 // pred_check_branch
        %229 = sbr.rel (%p227) target = $region36
      $region35: #{tpu_custom_call.1} parent=5 // pred_region
        // Predicated region
        $region37: #{tpu_custom_call.1} parent=35 // pred_check
          %p230 = pneg %p60
        $region38: #{tpu_custom_call.1} parent=35 // pred_check_branch
          %232 = sbr.rel (%p230) target = $region40
        $region39: #{tpu_custom_call.1} parent=35 // pred_region
          %s233 = sand.u32 %s19, 1
          %s234 = scalar_lea.sflag [#allocation7], %s233
          %s235 = sand.u32 %s50, 1
          %s236 = smul.addr %s235, 8
          %s237 = scalar_lea.vmem [#allocation6], %s236
          %239 = vsyncadd %s234, 0
          %s240 = smul.addr %s19, 2
          %s241 = smul.addr %s240, 4
          %s242 = scalar_lea.hbm %s1, %s241
          %s244 = sshll.u32 %s242, 4
          %s245 = int_to_ptr.hbm [resolvable:$true] %s244
          %s246 = sshll.u32 %s237, 4
          %s247 = int_to_ptr.vmem [resolvable:$true] %s246
          %249 = dma.hbm_to_vmem [thread:$0]  %s245, 128, %s247, %s234
        $region40: #{tpu_custom_call.1} parent=35 // pred_fallthru
          _
      $region36: #{tpu_custom_call.1} parent=5 // pred_fallthru
        _
      %p250 = scmp.le.s32.totalorder 1, %s19
      %p251 = scmp.lt.s32.totalorder %s19, 5
      %p252 = pnand %p250, %p251
      %p253 = pneg %p252
      // Predicated region
      $region41: #{tpu_custom_call.1} parent=5 // pred_check
        _
      $region42: #{tpu_custom_call.1} parent=5 // pred_check_branch
        %255 = sbr.rel (%p252) target = $region44
      $region43: #{tpu_custom_call.1} parent=5 // pred_region
        %s256 = ssub.s32 %s19, 1
        // Predicated region
        $region45: #{tpu_custom_call.1} parent=43 // pred_check
          %p257 = pneg %p40
        $region46: #{tpu_custom_call.1} parent=43 // pred_check_branch
          %259 = sbr.rel (%p257) target = $region48
        $region47: #{tpu_custom_call.1} parent=43 // pred_region
          %261 = dma.done [#allocation4], 128
        $region48: #{tpu_custom_call.1} parent=43 // pred_fallthru
          _
        %s262 = sand.u32 %s24, 1
        %s263 = scalar_lea.sflag [#allocation7], %s262
        %s264 = sand.u32 %s53, 1
        %s265 = smul.addr %s264, 8
        %s266 = scalar_lea.vmem [#allocation6], %s265
        // Predicated region
        $region49: #{tpu_custom_call.1} parent=43 // pred_check
          %p267 = pneg %p66
        $region50: #{tpu_custom_call.1} parent=43 // pred_check_branch
          %269 = sbr.rel (%p267) target = $region52
        $region51: #{tpu_custom_call.1} parent=43 // pred_region
          %271 = dma.done %s263, 128
        $region52: #{tpu_custom_call.1} parent=43 // pred_fallthru
          _
        // Predicated region
        $region53: #{tpu_custom_call.1} parent=43 // pred_check
          %p272 = pneg %p129
        $region54: #{tpu_custom_call.1} parent=43 // pred_check_branch
          %274 = sbr.rel (%p272) target = $region56
        $region55: #{tpu_custom_call.1} parent=43 // pred_region
          %276 = dma.done [#allocation7], 192
        $region56: #{tpu_custom_call.1} parent=43 // pred_fallthru
          _
        %p277 = pneg %p40
        %p278 = pneg %p37
        %s279 = sand.u32 %s24, 1
        %s280 = scalar_lea.sflag [#allocation7], %s279
        %s281 = sand.u32 %s53, 1
        %s282 = smul.addr %s281, 8
        %s283 = scalar_lea.vmem [#allocation6], %s282
        %p284 = pneg %p66
        %p285 = pneg %p63
        %p286 = pneg %p87
        %p287 = pneg %p84
        %p288 = pneg %p108
        %p289 = pneg %p105
        %p290 = pneg %p129
        %p291 = pneg %p126
        %p292 = pneg %p150
        %p293 = pneg %p147
        %p294 = pneg %p176
        %p295 = pneg %p173
        %s296 = sand.u32 %s163, 1
        %s297 = scalar_lea.sflag [#allocation5], %s296
        %s298 = sand.u32 %s163, 1
        %s299 = smul.addr %s298, 16
        %s300 = scalar_lea.vmem [#allocation9], %s299
        %vm302 = vcmask 125952
        %303 = vst.msk [vmem:[#allocation2] sm:$0xf] %vm302, 0
        %304 = vst.msk [vmem:[#allocation2 + $0xc] sm:$0xf] %vm302, 0
        %305 = vst.msk [vmem:[#allocation2 + $0x18] sm:$0xf] %vm302, 0
        %vm306 = vcmask 257152
        %307 = vst.msk [vmem:[#allocation2 + $0x8] sm:$0xf] %vm306, 0
        %308 = vst.msk [vmem:[#allocation2 + $0x14] sm:$0xf] %vm306, 0
        %309 = vst.msk [vmem:[#allocation2 + $0x20] sm:$0xf] %vm306, 0
        %v310 = vld [vmem:[%s266] sm:$0xff]
        %312 = vst [vmem:[#allocation1] ss:$2 sm:$0xff] %v310
        %v313 = vld.sshfl [vmem:[#allocation1] sm:$0xff pattern:$0x75316420]
        %v314 = vld.sshfl [vmem:[#allocation1 + $0x8] sm:$0xff pattern:$0x75316420]
        %v317 = vpack.c.bf16 %v314, %v313
        %v319 = vrot.slane %v317, 6
        %320 = vrot.lane.b32.xlu0 %v319, 16
        %v321 = vpop.permute.xlu0 %320
        %v322 = vrot.slane %v321, 4
        %vm323 = vcmask 130048
        %v324 = vsel %vm323, %v322, %v321
        %vm327 = vcmask 1043586
        %vm328 = vcmask 1047558
        %vm329 = vmor %vm328, %vm327
        %330 = vst.msk [vmem:[#allocation2] sm:$0xcc] %vm329, %v324
        %vm331 = vcmask 125954
        %332 = vst.msk [vmem:[#allocation2 + $0x8] sm:$0xc] %vm331, %v322
        %v333 = vld [vmem:[#allocation2] sm:$0xcc]
        %v334 = vld [vmem:[#allocation2 + $0x8] sm:$0xc]
        %v335 = vunpack.c.l.bf16 %v333
        %v336 = vunpack.c.h.bf16 %v333
        %v337 = vunpack.c.l.bf16 %v334
        %v338 = vld [vmem:[#allocation3] ss:$4 sm:$0x3]
        %v340 = vperm.slane %v338, 0
        %v341 = vperm.slane %v338, 1
        %342 = vrot.lane.b32.xlu0 %v340, 15
        %v343 = vpop.permute.xlu0 %342
        %344 = vrot.lane.b32.xlu0 %v341, 15
        %v345 = vpop.permute.xlu0 %344
        %vm346 = vcmask 121856
        %v347 = vsel %vm346, %v343, %v345
        %v351 = vmul.f32 %v335, %v343
        %v352 = vmul.f32 %v336, %v347
        %v353 = vmul.f32 %v337, %v345
        %v354 = vpack.c.bf16 %v352, %v351
        %v355 = vpack.c.bf16 %v353, %v353
        %v358 = vrot.slane %v354, 6
        %v359 = vrot.slane %v358, 4
        %v360 = vrot.slane %v355, 6
        %v361 = vrot.slane %v360, 4
        %362 = vrot.lane.b32.xlu0 %v359, 1
        %v363 = vpop.permute.xlu0 %362
        %364 = vrot.lane.b32.xlu0 %v361, 1
        %v365 = vpop.permute.xlu0 %364
        %v366 = vrot.slane %v363, 4
        %vm367 = vcmask 7168
        %v368 = vsel %vm367, %v366, %v363
        %v369 = vsel %vm367, %v366, %v365
        %vm372 = vcmask 1041536
        %vm373 = vcmask 1045508
        %vm374 = vmor %vm373, %vm372
        %375 = vst.msk [vmem:[#allocation2] sm:$0x33] %vm374, %v368
        %vm376 = vcmask 123904
        %377 = vst.msk [vmem:[#allocation2 + $0x8] sm:$0x3] %vm376, %v369
        %v378 = vld [vmem:[#allocation2] sm:$0xcc]
        %v379 = vld [vmem:[#allocation2 + $0x8] sm:$0xc]
        %v380 = vunpack.c.l.bf16 %v378
        %v381 = vunpack.c.h.bf16 %v378
        %v382 = vunpack.c.l.bf16 %v379
        %s383 = scalar_lea.vmem [#allocation3], 2
        %v384 = vld [vmem:[%s383] ss:$4 sm:$0x3]
        %v386 = vperm.slane %v384, 0
        %v387 = vperm.slane %v384, 1
        %388 = vrot.lane.b32.xlu0 %v386, 17
        %v389 = vpop.permute.xlu0 %388
        %390 = vrot.lane.b32.xlu0 %v387, 17
        %v391 = vpop.permute.xlu0 %390
        %vm392 = vcmask 138240
        %v393 = vsel %vm392, %v389, %v391
        %v397 = vmul.f32 %v380, %v389
        %v398 = vmul.f32 %v381, %v393
        %v399 = vmul.f32 %v382, %v391
        %v400 = vpack.c.bf16 %v398, %v397
        %v401 = vpack.c.bf16 %v399, %v399
        %v404 = vrot.slane %v400, 6
        %v405 = vrot.slane %v404, 4
        %v406 = vrot.slane %v401, 6
        %v407 = vrot.slane %v406, 4
        %408 = vrot.lane.b32.xlu0 %v405, 127
        %v409 = vpop.permute.xlu0 %408
        %410 = vrot.lane.b32.xlu0 %v407, 127
        %v411 = vpop.permute.xlu0 %410
        %v412 = vrot.slane %v409, 4
        %v413 = vrot.slane %v411, 4
        %vm414 = vcmask 1043456
        %v415 = vsel %vm414, %v412, %v413
        %vm416 = vcmask 1039360
        %v417 = vsel %vm416, %v409, %v415
        %420 = vst.msk [vmem:[#allocation2 + $0xc] sm:$0x33] %vm374, %v417
        %421 = vst.msk [vmem:[#allocation2 + $0x14] sm:$0x3] %vm376, %v411
        %v422 = vld [vmem:[#allocation2] sm:$0xff]
        %v423 = vld [vmem:[#allocation2 + $0xc] sm:$0x33]
        %v424 = vld [vmem:[%s2] sm:$0xf]
        %v425 = vld [vmem:[#allocation2 + $0x8] sm:$0xf]
        %v426 = vld [vmem:[#allocation2 + $0x14] sm:$0x3]
        %s427 = scalar_lea.vmem %s2, 4
        %v428 = vld [vmem:[%s427] sm:$0xf]
        %v433 = vunpack.c.l.b16 %v422
        %v434 = vunpack.c.h.b16 %v422
        %v435 = vunpack.c.l.b16 %v425
        %v436 = vunpack.c.l.b16 %v423
        %v437 = vunpack.c.h.b16 %v423
        %v438 = vunpack.c.l.b16 %v426
        %v439 = vpack.c.b16 %v436, %v433
        %v440 = vpack.c.b16 %v437, %v434
        %v441 = vpack.c.b16 %v438, %v435
        %442 = vrot.lane.b32.xlu0 %v439, 112
        %v443 = vpop.permute.xlu0 %442
        %444 = vrot.lane.b32.xlu0 %v440, 112
        %v445 = vpop.permute.xlu0 %444
        %446 = vrot.lane.b32.xlu0 %v441, 112
        %v447 = vpop.permute.xlu0 %446
        %vm448 = vcmask 916480
        %v449 = vsel %vm448, %v443, %v445
        %v450 = vsel %vm448, %v445, %v447
        %vm451 = vcmask 97280
        %v453 = vsel %vm451, %v428, 0
        %vm455 = vcmask 1045504
        %v457 = vsel %vm455, %v449, 0
        %v460 = vsel %vm455, %v450, 0
        %462 = vmatpush.bf16.msra.mxu0 0
        %463 = vmatpush.bf16.msra.mxu0 0
        %464 = vmatpush.bf16.msra.mxu0 0
        %465 = vmatpush.bf16.msra.mxu0 0
        %466 = vmatpush.bf16.msra.mxu0 0
        %467 = vmatpush.bf16.msra.mxu0 0
        %468 = vmatpush.bf16.msra.mxu0 0
        %469 = vmatpush.bf16.msra.mxu0 %v457
        %470 = vmatmul.bf16.gmra.mxu0 %v453
        %v471 = vpop.f32.mrf.mxu0
        %v472 = vadd.f32 0.0, %v471
        %v473 = vpop.f32.mrf.mxu0
        %474 = vdwg.mxu0
        %475 = vmatpush.bf16.msra.mxu0 0
        %476 = vmatpush.bf16.msra.mxu0 0
        %477 = vmatpush.bf16.msra.mxu0 0
        %478 = vmatpush.bf16.msra.mxu0 0
        %479 = vmatpush.bf16.msra.mxu0 0
        %480 = vmatpush.bf16.msra.mxu0 0
        %481 = vmatpush.bf16.msra.mxu0 0
        %482 = vmatpush.bf16.msra.mxu0 %v460
        %483 = vmatmul.bf16.gmra.mxu0 %v453
        %v484 = vpop.f32.mrf.mxu0
        %v485 = vadd.f32 0.0, %v484
        %v486 = vpop.f32.mrf.mxu0
        %487 = vdwg.mxu0
        %v489 = vsel %vm451, %v424, 0
        %v492 = vsel %vm455, %v439, 0
        %v495 = vsel %vm455, %v440, 0
        %497 = vmatpush.bf16.msra.mxu0 0
        %498 = vmatpush.bf16.msra.mxu0 0
        %499 = vmatpush.bf16.msra.mxu0 0
        %500 = vmatpush.bf16.msra.mxu0 0
        %501 = vmatpush.bf16.msra.mxu0 0
        %502 = vmatpush.bf16.msra.mxu0 0
        %503 = vmatpush.bf16.msra.mxu0 0
        %504 = vmatpush.bf16.msra.mxu0 %v492
        %505 = vmatmul.bf16.gmra.mxu0 %v489
        %v506 = vpop.f32.mrf.mxu0
        %v507 = vadd.f32 %v472, %v506
        %v508 = vpop.f32.mrf.mxu0
        %509 = vdwg.mxu0
        %510 = vmatpush.bf16.msra.mxu0 0
        %511 = vmatpush.bf16.msra.mxu0 0
        %512 = vmatpush.bf16.msra.mxu0 0
        %513 = vmatpush.bf16.msra.mxu0 0
        %514 = vmatpush.bf16.msra.mxu0 0
        %515 = vmatpush.bf16.msra.mxu0 0
        %516 = vmatpush.bf16.msra.mxu0 0
        %517 = vmatpush.bf16.msra.mxu0 %v495
        %518 = vmatmul.bf16.gmra.mxu0 %v489
        %v519 = vpop.f32.mrf.mxu0
        %v520 = vadd.f32 %v485, %v519
        %v521 = vpop.f32.mrf.mxu0
        %522 = vdwg.mxu0
        %s523 = scalar_lea.vmem %s2, 8
        %v524 = vld [vmem:[%s523] sm:$0xf]
        %525 = vrot.lane.b32.xlu0 %v439, 96
        %v526 = vpop.permute.xlu0 %525
        %527 = vrot.lane.b32.xlu0 %v440, 96
        %v528 = vpop.permute.xlu0 %527
        %529 = vrot.lane.b32.xlu0 %v441, 96
        %v530 = vpop.permute.xlu0 %529
        %vm531 = vcmask 785408
        %v532 = vsel %vm531, %v526, %v528
        %v533 = vsel %vm531, %v528, %v530
        %v535 = vsel %vm451, %v524, 0
        %v538 = vsel %vm455, %v532, 0
        %v541 = vsel %vm455, %v533, 0
        %543 = vmatpush.bf16.msra.mxu0 0
        %544 = vmatpush.bf16.msra.mxu0 0
        %545 = vmatpush.bf16.msra.mxu0 0
        %546 = vmatpush.bf16.msra.mxu0 0
        %547 = vmatpush.bf16.msra.mxu0 0
        %548 = vmatpush.bf16.msra.mxu0 0
        %549 = vmatpush.bf16.msra.mxu0 0
        %550 = vmatpush.bf16.msra.mxu0 %v538
        %551 = vmatmul.bf16.gmra.mxu0 %v535
        %v552 = vpop.f32.mrf.mxu0
        %v553 = vadd.f32 0.0, %v552
        %v554 = vpop.f32.mrf.mxu0
        %555 = vdwg.mxu0
        %556 = vmatpush.bf16.msra.mxu0 0
        %557 = vmatpush.bf16.msra.mxu0 0
        %558 = vmatpush.bf16.msra.mxu0 0
        %559 = vmatpush.bf16.msra.mxu0 0
        %560 = vmatpush.bf16.msra.mxu0 0
        %561 = vmatpush.bf16.msra.mxu0 0
        %562 = vmatpush.bf16.msra.mxu0 0
        %563 = vmatpush.bf16.msra.mxu0 %v541
        %564 = vmatmul.bf16.gmra.mxu0 %v535
        %v565 = vpop.f32.mrf.mxu0
        %v566 = vadd.f32 0.0, %v565
        %v567 = vpop.f32.mrf.mxu0
        %568 = vdwg.mxu0
        %v569 = vadd.f32 %v507, %v553
        %v570 = vadd.f32 %v520, %v566
        %v571 = vld [vmem:[%s3] sm:$0xff]
        %573 = vset.pattern.permute.xlu0 0
        %574 = vperm.xlu0 %573, %v571
        %v575 = vpop.permute.xlu0 %574
        %v577 = vadd.f32 %v569, %v575
        %v578 = vadd.f32 %v570, %v575
        %vm579 = vcmp.gt.f32.partialorder %v577, 0.0
        %vm580 = vcmp.gt.f32.partialorder %v578, 0.0
        %v581 = vmul.f32 %v577, 0.2
        %v582 = vmul.f32 %v578, 0.2
        %v583 = vsel %vm579, %v577, %v581
        %v584 = vsel %vm580, %v578, %v582
        %v585 = vpack.c.bf16 %v584, %v583
        %587 = vrot.lane.b32.xlu0 %v585, 16
        %v588 = vpop.permute.xlu0 %587
        %v589 = vrot.slane %v588, 4
        %v590 = vsel %vm323, %v589, %v588
        %vm593 = vcmask 1043584
        %vm594 = vcmask 1047556
        %vm595 = vmor %vm594, %vm593
        %596 = vst.msk [vmem:[#allocation2 + $0xc] sm:$0xff] %vm595, %v590
        %597 = vst.msk [vmem:[#allocation2 + $0x14] sm:$0xf] %vm302, %v589
        %v598 = vld [vmem:[#allocation2 + $0xc] sm:$0xff]
        %v599 = vld [vmem:[#allocation2 + $0x14] sm:$0xf]
        %v600 = vunpack.c.l.bf16 %v598
        %v601 = vunpack.c.h.bf16 %v598
        %v602 = vunpack.c.l.bf16 %v599
        %v603 = vld [vmem:[#allocation3] ss:$4 sm:$0x3]
        %v605 = vperm.slane %v603, 0
        %v606 = vperm.slane %v603, 1
        %607 = vrot.lane.b32.xlu0 %v605, 15
        %v608 = vpop.permute.xlu0 %607
        %609 = vrot.lane.b32.xlu0 %v606, 15
        %v610 = vpop.permute.xlu0 %609
        %v611 = vsel %vm346, %v608, %v610
        %v615 = vmul.f32 %v600, %v608
        %v616 = vmul.f32 %v601, %v611
        %v617 = vmul.f32 %v602, %v610
        %v618 = vpack.c.bf16 %v616, %v615
        %v619 = vpack.c.bf16 %v617, %v617
        %622 = vrot.lane.b32.xlu0 %v618, 1
        %v623 = vpop.permute.xlu0 %622
        %624 = vrot.lane.b32.xlu0 %v619, 1
        %v625 = vpop.permute.xlu0 %624
        %v626 = vrot.slane %v623, 4
        %v627 = vsel %vm367, %v626, %v623
        %v628 = vsel %vm367, %v626, %v625
        %631 = vst.msk [vmem:[#allocation2] sm:$0xff] %vm595, %v627
        %632 = vst.msk [vmem:[#allocation2 + $0x8] sm:$0xf] %vm302, %v628
        %v633 = vld [vmem:[#allocation2 + $0xc] sm:$0xff]
        %v634 = vld [vmem:[#allocation2 + $0x14] sm:$0xf]
        %v635 = vunpack.c.l.bf16 %v633
        %v636 = vunpack.c.h.bf16 %v633
        %v637 = vunpack.c.l.bf16 %v634
        %v638 = vld [vmem:[%s383] ss:$4 sm:$0x3]
        %v640 = vperm.slane %v638, 0
        %v641 = vperm.slane %v638, 1
        %642 = vrot.lane.b32.xlu0 %v640, 17
        %v643 = vpop.permute.xlu0 %642
        %644 = vrot.lane.b32.xlu0 %v641, 17
        %v645 = vpop.permute.xlu0 %644
        %v646 = vsel %vm392, %v643, %v645
        %v650 = vmul.f32 %v635, %v643
        %v651 = vmul.f32 %v636, %v646
        %v652 = vmul.f32 %v637, %v645
        %v653 = vpack.c.bf16 %v651, %v650
        %v654 = vpack.c.bf16 %v652, %v652
        %657 = vrot.lane.b32.xlu0 %v653, 127
        %v658 = vpop.permute.xlu0 %657
        %659 = vrot.lane.b32.xlu0 %v654, 127
        %v660 = vpop.permute.xlu0 %659
        %v661 = vrot.slane %v658, 4
        %v662 = vrot.slane %v660, 4
        %v663 = vsel %vm414, %v661, %v662
        %v664 = vsel %vm416, %v658, %v663
        %667 = vst.msk [vmem:[#allocation2 + $0x18] sm:$0xff] %vm595, %v664
        %668 = vst.msk [vmem:[#allocation2 + $0x20] sm:$0xf] %vm302, %v660
        %v669 = vld [vmem:[#allocation2] sm:$0xff]
        %v670 = vld [vmem:[#allocation2 + $0xc] sm:$0xff]
        %v671 = vld [vmem:[#allocation2 + $0x18] sm:$0xff]
        %v672 = vld [vmem:[#allocation8] sm:$0xf]
        %v673 = vld [vmem:[#allocation2 + $0x8] sm:$0xf]
        %v674 = vld [vmem:[#allocation2 + $0x14] sm:$0xf]
        %v675 = vld [vmem:[#allocation2 + $0x20] sm:$0xf]
        %s676 = scalar_lea.vmem [#allocation8], 4
        %v677 = vld [vmem:[%s676] sm:$0xf]
        %v684 = vunpack.c.l.b16 %v669
        %v685 = vunpack.c.h.b16 %v669
        %v686 = vunpack.c.l.b16 %v673
        %v687 = vunpack.c.l.b16 %v670
        %v688 = vunpack.c.h.b16 %v670
        %v689 = vunpack.c.l.b16 %v674
        %v690 = vunpack.c.l.b16 %v671
        %v691 = vunpack.c.h.b16 %v671
        %v692 = vunpack.c.l.b16 %v675
        %v693 = vpack.c.b16 %v687, %v684
        %v694 = vpack.c.b16 %v688, %v685
        %v695 = vpack.c.b16 %v689, %v686
        %v696 = vpack.c.b16 %v690, %v690
        %v697 = vpack.c.b16 %v691, %v691
        %v698 = vpack.c.b16 %v692, %v692
        %699 = vrot.lane.b32.xlu0 %v693, 112
        %v700 = vpop.permute.xlu0 %699
        %701 = vrot.lane.b32.xlu0 %v694, 112
        %v702 = vpop.permute.xlu0 %701
        %703 = vrot.lane.b32.xlu0 %v695, 112
        %v704 = vpop.permute.xlu0 %703
        %705 = vrot.lane.b32.xlu0 %v696, 112
        %v706 = vpop.permute.xlu0 %705
        %707 = vrot.lane.b32.xlu0 %v697, 112
        %v708 = vpop.permute.xlu0 %707
        %709 = vrot.lane.b32.xlu0 %v698, 112
        %v710 = vpop.permute.xlu0 %709
        %v711 = vsel %vm448, %v700, %v702
        %v712 = vsel %vm448, %v702, %v704
        %v713 = vsel %vm448, %v706, %v708
        %v714 = vsel %vm448, %v708, %v710
        %vm717 = vcmask 195584
        %v719 = vsel %vm717, %v677, 0
        %vm721 = vcmask 1043456
        %v723 = vsel %vm721, %v713, 0
        %v726 = vsel %vm721, %v714, 0
        %728 = vmatpush.bf16.msra.mxu0 0
        %729 = vmatpush.bf16.msra.mxu0 0
        %730 = vmatpush.bf16.msra.mxu0 0
        %731 = vmatpush.bf16.msra.mxu0 0
        %732 = vmatpush.bf16.msra.mxu0 0
        %733 = vmatpush.bf16.msra.mxu0 0
        %734 = vmatpush.bf16.msra.mxu0 %v723
        %735 = vmatpush.bf16.msra.mxu0 %v711
        %736 = vmatmul.bf16.gmra.mxu0 %v719
        %v737 = vpop.f32.mrf.mxu0
        %v738 = vadd.f32 0.0, %v737
        %v739 = vpop.f32.mrf.mxu0
        %740 = vdwg.mxu0
        %741 = vmatpush.bf16.msra.mxu0 0
        %742 = vmatpush.bf16.msra.mxu0 0
        %743 = vmatpush.bf16.msra.mxu0 0
        %744 = vmatpush.bf16.msra.mxu0 0
        %745 = vmatpush.bf16.msra.mxu0 0
        %746 = vmatpush.bf16.msra.mxu0 0
        %747 = vmatpush.bf16.msra.mxu0 %v726
        %748 = vmatpush.bf16.msra.mxu0 %v712
        %749 = vmatmul.bf16.gmra.mxu0 %v719
        %v750 = vpop.f32.mrf.mxu0
        %v751 = vadd.f32 0.0, %v750
        %v752 = vpop.f32.mrf.mxu0
        %753 = vdwg.mxu0
        %v757 = vsel %vm717, %v672, 0
        %v760 = vsel %vm721, %v696, 0
        %v763 = vsel %vm721, %v697, 0
        %765 = vmatpush.bf16.msra.mxu0 0
        %766 = vmatpush.bf16.msra.mxu0 0
        %767 = vmatpush.bf16.msra.mxu0 0
        %768 = vmatpush.bf16.msra.mxu0 0
        %769 = vmatpush.bf16.msra.mxu0 0
        %770 = vmatpush.bf16.msra.mxu0 0
        %771 = vmatpush.bf16.msra.mxu0 %v760
        %772 = vmatpush.bf16.msra.mxu0 %v693
        %773 = vmatmul.bf16.gmra.mxu0 %v757
        %v774 = vpop.f32.mrf.mxu0
        %v775 = vadd.f32 %v738, %v774
        %v776 = vpop.f32.mrf.mxu0
        %777 = vdwg.mxu0
        %778 = vmatpush.bf16.msra.mxu0 0
        %779 = vmatpush.bf16.msra.mxu0 0
        %780 = vmatpush.bf16.msra.mxu0 0
        %781 = vmatpush.bf16.msra.mxu0 0
        %782 = vmatpush.bf16.msra.mxu0 0
        %783 = vmatpush.bf16.msra.mxu0 0
        %784 = vmatpush.bf16.msra.mxu0 %v763
        %785 = vmatpush.bf16.msra.mxu0 %v694
        %786 = vmatmul.bf16.gmra.mxu0 %v757
        %v787 = vpop.f32.mrf.mxu0
        %v788 = vadd.f32 %v751, %v787
        %v789 = vpop.f32.mrf.mxu0
        %790 = vdwg.mxu0
        %s791 = scalar_lea.vmem [#allocation8], 8
        %v792 = vld [vmem:[%s791] sm:$0xf]
        %793 = vrot.lane.b32.xlu0 %v693, 96
        %v794 = vpop.permute.xlu0 %793
        %795 = vrot.lane.b32.xlu0 %v694, 96
        %v796 = vpop.permute.xlu0 %795
        %797 = vrot.lane.b32.xlu0 %v695, 96
        %v798 = vpop.permute.xlu0 %797
        %799 = vrot.lane.b32.xlu0 %v696, 96
        %v800 = vpop.permute.xlu0 %799
        %801 = vrot.lane.b32.xlu0 %v697, 96
        %v802 = vpop.permute.xlu0 %801
        %803 = vrot.lane.b32.xlu0 %v698, 96
        %v804 = vpop.permute.xlu0 %803
        %v805 = vsel %vm531, %v794, %v796
        %v806 = vsel %vm531, %v796, %v798
        %v807 = vsel %vm531, %v800, %v802
        %v808 = vsel %vm531, %v802, %v804
        %v812 = vsel %vm717, %v792, 0
        %v815 = vsel %vm721, %v807, 0
        %v818 = vsel %vm721, %v808, 0
        %820 = vmatpush.bf16.msra.mxu0 0
        %821 = vmatpush.bf16.msra.mxu0 0
        %822 = vmatpush.bf16.msra.mxu0 0
        %823 = vmatpush.bf16.msra.mxu0 0
        %824 = vmatpush.bf16.msra.mxu0 0
        %825 = vmatpush.bf16.msra.mxu0 0
        %826 = vmatpush.bf16.msra.mxu0 %v815
        %827 = vmatpush.bf16.msra.mxu0 %v805
        %828 = vmatmul.bf16.gmra.mxu0 %v812
        %v829 = vpop.f32.mrf.mxu0
        %v830 = vadd.f32 0.0, %v829
        %v831 = vpop.f32.mrf.mxu0
        %832 = vdwg.mxu0
        %833 = vmatpush.bf16.msra.mxu0 0
        %834 = vmatpush.bf16.msra.mxu0 0
        %835 = vmatpush.bf16.msra.mxu0 0
        %836 = vmatpush.bf16.msra.mxu0 0
        %837 = vmatpush.bf16.msra.mxu0 0
        %838 = vmatpush.bf16.msra.mxu0 0
        %839 = vmatpush.bf16.msra.mxu0 %v818
        %840 = vmatpush.bf16.msra.mxu0 %v806
        %841 = vmatmul.bf16.gmra.mxu0 %v812
        %v842 = vpop.f32.mrf.mxu0
        %v843 = vadd.f32 0.0, %v842
        %v844 = vpop.f32.mrf.mxu0
        %845 = vdwg.mxu0
        %v846 = vadd.f32 %v775, %v830
        %v847 = vadd.f32 %v788, %v843
        %v848 = vld [vmem:[%s5] sm:$0xff]
        %850 = vset.pattern.permute.xlu0 0
        %851 = vperm.xlu0 %850, %v848
        %v852 = vpop.permute.xlu0 %851
        %v854 = vadd.f32 %v846, %v852
        %v855 = vadd.f32 %v847, %v852
        %vm856 = vcmp.gt.f32.partialorder %v854, 0.0
        %vm857 = vcmp.gt.f32.partialorder %v855, 0.0
        %v858 = vmul.f32 %v854, 0.2
        %v859 = vmul.f32 %v855, 0.2
        %v860 = vsel %vm856, %v854, %v858
        %v861 = vsel %vm857, %v855, %v859
        %862 = vst [vmem:[%s300] sm:$0xff] %v860
        %863 = vst [vmem:[%s300 + $0x8] sm:$0xff] %v861
        %s864 = sand.u32 %s163, 1
        %s865 = scalar_lea.sflag [#allocation5], %s864
        %s866 = sand.u32 %s163, 1
        %s867 = smul.addr %s866, 16
        %s868 = scalar_lea.vmem [#allocation9], %s867
        // Predicated region
        $region57: #{tpu_custom_call.1} parent=43 // pred_check
          %p869 = pneg %p173
        $region58: #{tpu_custom_call.1} parent=43 // pred_check_branch
          %871 = sbr.rel (%p869) target = $region60
        $region59: #{tpu_custom_call.1} parent=43 // pred_region
          %873 = vsyncadd %s865, 0
          %s874 = smul.addr %s24, 2
          %s875 = smul.addr %s874, 8
          %s876 = scalar_lea.hbm %s6, %s875
          %s878 = sshll.u32 %s868, 4
          %s879 = int_to_ptr.vmem [resolvable:$true] %s878
          %s880 = sshll.u32 %s876, 4
          %s881 = int_to_ptr.hbm [resolvable:$true] %s880
          %883 = dma.vmem_to_hbm [thread:$0]  %s879, 256, %s881, %s865
        $region60: #{tpu_custom_call.1} parent=43 // pred_fallthru
          _
      $region44: #{tpu_custom_call.1} parent=5 // pred_fallthru
        _
      %p884 = scmp.le.s32.totalorder 2, %s19
      // Predicated region
      $region61: #{tpu_custom_call.1} parent=5 // pred_check
        %p885 = pneg %p884
      $region62: #{tpu_custom_call.1} parent=5 // pred_check_branch
        %887 = sbr.rel (%p885) target = $region64
      $region63: #{tpu_custom_call.1} parent=5 // pred_region
        %s888 = ssub.s32 %s19, 2
        // Predicated region
        $region65: #{tpu_custom_call.1} parent=63 // pred_check
          %p889 = pneg %p179
        $region66: #{tpu_custom_call.1} parent=63 // pred_check_branch
          %891 = sbr.rel (%p889) target = $region68
        $region67: #{tpu_custom_call.1} parent=63 // pred_region
          %s892 = sand.u32 %s164, 1
          %s893 = scalar_lea.sflag [#allocation5], %s892
          %s894 = sand.u32 %s164, 1
          %s895 = smul.addr %s894, 16
          %s896 = scalar_lea.vmem [#allocation9], %s895
          %898 = dma.done %s893, 256
        $region68: #{tpu_custom_call.1} parent=63 // pred_fallthru
          _
      $region64: #{tpu_custom_call.1} parent=5 // pred_fallthru
        _
    $region6: #{tpu_custom_call.1} parent=1 // loop_footer
      %s23 = sadd.s32 1, %s19
    $region7: #{tpu_custom_call.1} parent=1 // loop_footer_branch
      %18 = sbr.rel target = $region3
    $region8: #{tpu_custom_call.1} parent=1 // loop_exit
      _
    %899 = vsyncpa [#allocation4], 1
    %s900 = scalar_lea.sflag [#allocation4], 1
    %901 = vsyncpa %s900, 1
    %902 = vsyncpa [#allocation7], 1
    %s903 = scalar_lea.sflag [#allocation7], 1
    %904 = vsyncpa %s903, 1
    %905 = vsyncpa [#allocation5], 1
    %s906 = scalar_lea.sflag [#allocation5], 1
    %907 = vsyncpa %s906, 1

</llo_original>
